<compile_context>
chip_gen: v7x
topology: tpu7x:2x2x1
jax: 0.10.0
libtpu: 0.0.40
codegen_flags: <defaults>
</compile_context>

<pallas_src>
import math

import numpy as np
import jax
import jax.numpy as jnp
from jax.experimental import pallas as pl
from jax.experimental.pallas import tpu as pltpu


def _fca_dct_kernel(x_ref, w_ref, o_ref):
    # x_ref: (Bt, C, HW)   w_ref: (C, HW)   o_ref: (Bt, 1, C)
    x = x_ref[...].astype(jnp.float32)
    w = w_ref[...].astype(jnp.float32)
    # elementwise multiply (VPU) + lane-axis reduction (XLU)
    s = jnp.sum(x * w[None, :, :], axis=-1)          # (Bt, C)
    o_ref[...] = s[:, None, :].astype(o_ref.dtype)   # (Bt, 1, C)


def fca_dct_layer(x, dct_weight, *, target_block_bytes=1 << 20):
    """x: (B, C, H, W); dct_weight: (C, H, W). Returns (B, C)."""
    B, C, H, W = x.shape
    assert dct_weight.shape == (C, H, W)
    HW = H * W

    xf = x.reshape(B, C, HW)                              # lane-dense slab
    wf = dct_weight.reshape(C, HW).astype(jnp.float32)

    # pick a batch-block size: ~target_block_bytes per input buffer, but keep
    # at least 2 grid steps (v7x megacore) and make it divide B evenly.
    per_batch_bytes = C * HW * x.dtype.itemsize
    bt = max(1, min(B, target_block_bytes // max(per_batch_bytes, 1)))
    if B >= 2:
        bt = max(1, min(bt, B // 2))
    while B % bt != 0:
        bt -= 1
    grid = (B // bt,)

    out = pl.pallas_call(
        _fca_dct_kernel,
        grid=grid,
        in_specs=[
            pl.BlockSpec((bt, C, HW), lambda b: (b, 0, 0)),   # x block
            pl.BlockSpec((C, HW), lambda b: (0, 0)),          # DCT filter (resident)
        ],
        out_specs=pl.BlockSpec((bt, 1, C), lambda b: (b, 0, 0)),
        out_shape=jax.ShapeDtypeStruct((B, 1, C), x.dtype),
        compiler_params=pltpu.CompilerParams(dimension_semantics=("parallel",)),
    )(xf, wf)
    return out.reshape(B, C)


# ---------------------------------------------------------------------------
# DCT filter construction (mirrors FcaDCTLayer.get_dct_filter / build_filter).
# This is a constant buffer built at module init, so it is computed host-side.
# ---------------------------------------------------------------------------
def build_dct_filter(height, width, mapper_x, mapper_y, channels):
    assert len(mapper_x) == len(mapper_y)
    num_freq = len(mapper_x)
    assert channels % num_freq == 0

    def bf(pos, freq, POS):
        r = math.cos(math.pi * freq * (pos + 0.5) / POS) / math.sqrt(POS)
        return r if freq == 0 else r * math.sqrt(2)

    dct = np.zeros((channels, height, width), np.float32)
    c_part = channels // num_freq
    for i, (u_x, v_y) in enumerate(zip(mapper_x, mapper_y)):
        for t_x in range(height):
            for t_y in range(width):
                dct[i * c_part:(i + 1) * c_part, t_x, t_y] = (
                    bf(t_x, u_x, height) * bf(t_y, v_y, width))
    return jnp.asarray(dct)


def fca_dct_ref(x, dct_weight):
    """Pure-JAX reference replicating the PyTorch forward."""
    return jnp.sum(x * dct_weight[None], axis=(2, 3))


if __name__ == "__main__":
    key = jax.random.PRNGKey(0)

    # small shapes consistent with the module: batch=2, channels=32, 16x16 DCT tile
    B, C, H, W = 2, 32, 16, 16
    mapper_x = [0, 1, 2, 3]
    mapper_y = [0, 1, 2, 3]          # channels % num_freq == 0

    x = jax.random.normal(key, (B, C, H, W), jnp.float32)
    weight = build_dct_filter(H, W, mapper_x, mapper_y, C)

    out = jax.block_until_ready(fca_dct_layer(x, weight))
    ref = fca_dct_ref(x, weight)

    assert out.shape == (B, C) and out.dtype == x.dtype
    assert jnp.allclose(out, ref, atol=1e-4, rtol=1e-4), float(jnp.max(jnp.abs(out - ref)))
    print("KERNEL_OK")
</pallas_src>

<mosaic_0001>
module attributes {stable_mosaic.version = 11 : i64} {
  func.func @_fca_dct_kernel(%arg0: i32, %arg1: memref<1x32x256xf32, #tpu.memory_space<vmem>>, %arg2: memref<32x256xf32, #tpu.memory_space<vmem>>, %arg3: memref<1x1x32xf32, #tpu.memory_space<vmem>>) attributes {dimension_semantics = [#tpu.dimension_semantics<parallel>], iteration_bounds = array<i64: 2>, scalar_prefetch = 0 : i64, scratch_operands = 0 : i64, tpu.core_type = #tpu.core_type<tc>, window_params = [{transform_indices = @transform_0, window_bounds = array<i64: 1, 32, 256>}, {pipeline_mode = #tpu.pipeline_mode<synchronous>, transform_indices = @transform_1, window_bounds = array<i64: 32, 256>}, {transform_indices = @transform_2, window_bounds = array<i64: 1, 1, 32>}]} {
    %c0 = arith.constant 0 : index
    %c0_0 = arith.constant 0 : index
    %c0_1 = arith.constant 0 : index
    %0 = vector.load %arg1[%c0, %c0_0, %c0_1] : memref<1x32x256xf32, #tpu.memory_space<vmem>>, vector<1x32x256xf32>
    %c0_2 = arith.constant 0 : index
    %c0_3 = arith.constant 0 : index
    %1 = vector.load %arg2[%c0_2, %c0_3] : memref<32x256xf32, #tpu.memory_space<vmem>>, vector<32x256xf32>
    %2 = vector.shape_cast %1 : vector<32x256xf32> to vector<1x32x256xf32>
    %3 = arith.mulf %0, %2 : vector<1x32x256xf32>
    %cst = arith.constant dense<0.000000e+00> : vector<1x32xf32>
    %4 = vector.multi_reduction <add>, %3, %cst [2] : vector<1x32x256xf32> to vector<1x32xf32>
    %5 = vector.shape_cast %4 : vector<1x32xf32> to vector<1x1x32xf32>
    %c0_4 = arith.constant 0 : index
    %c0_5 = arith.constant 0 : index
    %c0_6 = arith.constant 0 : index
    %6 = vector.load %arg3[%c0_4, %c0_5, %c0_6] : memref<1x1x32xf32, #tpu.memory_space<vmem>>, vector<1x1x32xf32>
    tpu.vector_store %arg3[%c0_4, %c0_5, %c0_6], %5 {strides = array<i32>} : memref<1x1x32xf32, #tpu.memory_space<vmem>>, vector<1x1x32xf32>,
    return
  }
  func.func @transform_0(%arg0: i32) -> (i32, i32, i32) {
    %c0_i32 = arith.constant 0 : i32
    %c0_i32_0 = arith.constant 0 : i32
    %c0_i32_1 = arith.constant 0 : i32
    return %arg0, %c0_i32, %c0_i32_0 : i32, i32, i32
  }
  func.func @transform_1(%arg0: i32) -> (i32, i32) {
    %c0_i32 = arith.constant 0 : i32
    %c0_i32_0 = arith.constant 0 : i32
    %c0_i32_1 = arith.constant 0 : i32
    return %c0_i32, %c0_i32_0 : i32, i32
  }
  func.func @transform_2(%arg0: i32) -> (i32, i32, i32) {
    %c0_i32 = arith.constant 0 : i32
    %c0_i32_0 = arith.constant 0 : i32
    %c0_i32_1 = arith.constant 0 : i32
    return %arg0, %c0_i32, %c0_i32_0 : i32, i32, i32
  }
}

</mosaic_0001>

<llo_original>
// kernel: tpu_custom_call.1
$region0: #{tpu_custom_call.1}
  #allocation0 [shape = 'u32[]', space=smem, size = 0x4, offset = 0x4, fixed_abs, tag = 'smem constant byte address 0x4 - core index']
  #allocation1 [shape = 'u32[144,128]{1,0:T(1,128)}', space=vmem, size = 0x12000, scoped, tag = 'internal scratch']
  %s0 = inlined_call_operand.hbm [shape: f32[2,32,256], index: 0, kind: input, shape index: {}]
  %s1 = inlined_call_operand.hbm [shape: f32[32,256], index: 1, kind: input, shape index: {}]
  %s2 = inlined_call_operand.hbm [shape: f32[2,1,32], index: 2, kind: output, shape index: {}]
  %s3 = sld [smem:[#allocation0]]
  $region49: #{tpu_custom_call.1} parent=0
    _
  %s5 = ssub.s32 1, %s3
  %s6 = scalar_select 0, %s5, %s3
  $region1: #{tpu_custom_call.1} parent=0
    #allocation2 [shape = 'u8[65536]{0}', space=vmem, size = 0x10000, scoped, tag = 'input window, operand 0']
    #allocation3 [shape = 's32[2]{0}', space=sflag, size = 0x8, scoped, tag = 'scoped memory for tpu_custom_call.1']
    #allocation4 [shape = 's32[2]{0}', space=sflag, size = 0x8, scoped, tag = 'scoped memory for tpu_custom_call.1']
    #allocation5 [shape = 'u8[32768]{0}', space=vmem, size = 0x8000, scoped, tag = 'input window, operand 1, single buffered']
    #allocation6 [shape = 's32[1]{0}', space=sflag, size = 0x4, scoped, tag = 'scoped memory for tpu_custom_call.1']
    #allocation7 [shape = 'u8[1024]{0}', space=vmem, size = 0x400, scoped, tag = 'output window, operand 0']
    %7 = vsyncpa [#allocation3], 0
    %s8 = scalar_lea.sflag [#allocation3], 1
    %9 = vsyncpa %s8, 0
    %10 = vsyncpa [#allocation6], 0
    %11 = vsyncpa [#allocation4], 0
    %s12 = scalar_lea.sflag [#allocation4], 1
    %13 = vsyncpa %s12, 0
    loop: start=0, step=1, limit=4
    $region2: #{tpu_custom_call.1} parent=1 // loop_pre_header
      _
    $region3: #{tpu_custom_call.1} parent=1 // loop_header
      %s15 = sphi 0, %s19
      %p16 = scmp.ge.s32.totalorder %s15, 4
      %s25 = sphi 0, %s27
      %s28 = sphi 0, %s25
      %s29 = sphi 0, %s28
      %s45 = sphi 0, %s29
      %s49 = sphi 0, %s49
      %s51 = sphi 0, %s49
      %s52 = sphi 0, %s51
      %s66 = sphi 0, %s52
      %s72 = sphi 0, %s74
      %s75 = sphi 0, %s72
      %s76 = sphi 0, %s75
      %s92 = sphi 0, %s76
    $region4: #{tpu_custom_call.1} parent=1 // loop_header_branch
      %18 = sbr.rel (%p16) target = $region8
    $region5: #{tpu_custom_call.1} parent=1 // loop_body
      %s20 = ssub.s32 %s15, 1
      %s21 = ssub.s32 %s15, 2
      %s22 = sadd.s32 %s15, 1
      %s23 = ssub.s32 %s15, %s22
      %p24 = scmp.eq.s32.totalorder %s23, 0
      %s26 = sadd.s32 %s25, 1
      %s27 = scalar_select %p24, %s25, %s26
      %p30 = pneg %p24
      %p31 = scmp.eq.s32.totalorder %s15, 1
      %p32 = por %p30, %p31
      %p33 = scmp.ne.s32.totalorder %s25, %s28
      %p34 = scmp.eq.s32.totalorder %s15, 0
      %p35 = por %p33, %p34
      %p36 = scmp.ne.s32.totalorder %s25, %s28
      %p37 = scmp.eq.s32.totalorder %s20, 1
      %p38 = por %p36, %p37
      %p39 = scmp.ne.s32.totalorder %s28, %s29
      %p40 = scmp.eq.s32.totalorder %s20, 0
      %p41 = por %p39, %p40
      %p42 = scmp.ne.s32.totalorder %s28, %s29
      %p43 = scmp.eq.s32.totalorder %s21, 1
      %p44 = por %p42, %p43
      %p46 = scmp.ne.s32.totalorder %s29, %s45
      %p47 = scmp.eq.s32.totalorder %s21, 0
      %p48 = por %p46, %p47
      %s50 = sadd.s32 %s49, 1
      %p53 = scmp.eq.s32.totalorder %s15, 1
      %p54 = scmp.ne.s32.totalorder %s49, %s51
      %p55 = scmp.eq.s32.totalorder %s15, 0
      %p56 = por %p54, %p55
      %p57 = scmp.ne.s32.totalorder %s49, %s51
      %p58 = scmp.eq.s32.totalorder %s20, 1
      %p59 = por %p57, %p58
      %p60 = scmp.ne.s32.totalorder %s51, %s52
      %p61 = scmp.eq.s32.totalorder %s20, 0
      %p62 = por %p60, %p61
      %p63 = scmp.ne.s32.totalorder %s51, %s52
      %p64 = scmp.eq.s32.totalorder %s21, 1
      %p65 = por %p63, %p64
      %p67 = scmp.ne.s32.totalorder %s52, %s66
      %p68 = scmp.eq.s32.totalorder %s21, 0
      %p69 = por %p67, %p68
      %s70 = ssub.s32 %s15, %s22
      %p71 = scmp.eq.s32.totalorder %s70, 0
      %s73 = sadd.s32 %s72, 1
      %s74 = scalar_select %p71, %s72, %s73
      %p77 = pneg %p71
      %p78 = scmp.eq.s32.totalorder %s15, 1
      %p79 = por %p77, %p78
      %p80 = scmp.ne.s32.totalorder %s72, %s75
      %p81 = scmp.eq.s32.totalorder %s15, 0
      %p82 = por %p80, %p81
      %p83 = scmp.ne.s32.totalorder %s72, %s75
      %p84 = scmp.eq.s32.totalorder %s20, 1
      %p85 = por %p83, %p84
      %p86 = scmp.ne.s32.totalorder %s75, %s76
      %p87 = scmp.eq.s32.totalorder %s20, 0
      %p88 = por %p86, %p87
      %p89 = scmp.ne.s32.totalorder %s75, %s76
      %p90 = scmp.eq.s32.totalorder %s21, 1
      %p91 = por %p89, %p90
      %p93 = scmp.ne.s32.totalorder %s76, %s92
      %p94 = scmp.eq.s32.totalorder %s21, 0
      %p95 = por %p93, %p94
      %p96 = scmp.le.s32.totalorder 1, %s15
      %p97 = scmp.lt.s32.totalorder %s15, 3
      %p98 = pnand %p96, %p97
      %p99 = pneg %p98
      // Predicated region
      $region9: #{tpu_custom_call.1} parent=5 // pred_check
        _
      $region10: #{tpu_custom_call.1} parent=5 // pred_check_branch
        %101 = sbr.rel (%p98) target = $region12
      $region11: #{tpu_custom_call.1} parent=5 // pred_region
        %s102 = ssub.s32 %s15, 1
        // Predicated region
        $region13: #{tpu_custom_call.1} parent=11 // pred_check
          %p103 = pneg %p62
        $region14: #{tpu_custom_call.1} parent=11 // pred_check_branch
          %105 = sbr.rel (%p103) target = $region16
        $region15: #{tpu_custom_call.1} parent=11 // pred_region
          %s107 = ssub.s32 1024, 1024
          %108 = vsyncadd [#allocation6], %s107
          %s109 = sshll.u32 [#allocation5], 4
          %s110 = int_to_ptr.vmem [resolvable:$true] %s109
          %115 = dma.hbm_to_vmem [thread:$0]  %s1, 1024, %s110, [#allocation6], 256, 256, 16
        $region16: #{tpu_custom_call.1} parent=11 // pred_fallthru
          _
      $region12: #{tpu_custom_call.1} parent=5 // pred_fallthru
        _
      %p116 = scmp.lt.s32.totalorder %s15, 2
      // Predicated region
      $region17: #{tpu_custom_call.1} parent=5 // pred_check
        %p117 = pneg %p116
      $region18: #{tpu_custom_call.1} parent=5 // pred_check_branch
        %119 = sbr.rel (%p117) target = $region20
      $region19: #{tpu_custom_call.1} parent=5 // pred_region
        // Predicated region
        $region21: #{tpu_custom_call.1} parent=19 // pred_check
          %p120 = pneg %p35
        $region22: #{tpu_custom_call.1} parent=19 // pred_check_branch
          %122 = sbr.rel (%p120) target = $region24
        $region23: #{tpu_custom_call.1} parent=19 // pred_region
          %s123 = sand.u32 %s25, 1
          %s124 = scalar_lea.sflag [#allocation3], %s123
          %s125 = sand.u32 %s25, 1
          %s126 = smul.addr %s125, 64
          %s127 = scalar_lea.vmem [#allocation2], %s126
          %s129 = ssub.s32 1024, 1024
          %130 = vsyncadd %s124, %s129
          %s131 = smul.addr %s15, 8
          %s132 = smul.addr %s131, 128
          %s133 = scalar_lea.hbm %s0, %s132
          %s134 = sshll.u32 %s127, 4
          %s135 = int_to_ptr.vmem [resolvable:$true] %s134
          %140 = dma.hbm_to_vmem [thread:$0]  %s133, 1024, %s135, %s124, 256, 256, 16
        $region24: #{tpu_custom_call.1} parent=19 // pred_fallthru
          _
      $region20: #{tpu_custom_call.1} parent=5 // pred_fallthru
        _
      %p141 = scmp.le.s32.totalorder 1, %s15
      %p142 = scmp.lt.s32.totalorder %s15, 3
      %p143 = pnand %p141, %p142
      %p144 = pneg %p143
      // Predicated region
      $region25: #{tpu_custom_call.1} parent=5 // pred_check
        _
      $region26: #{tpu_custom_call.1} parent=5 // pred_check_branch
        %146 = sbr.rel (%p143) target = $region28
      $region27: #{tpu_custom_call.1} parent=5 // pred_region
        %s147 = ssub.s32 %s15, 1
        %s148 = sand.u32 %s28, 1
        %s149 = scalar_lea.sflag [#allocation3], %s148
        %s150 = sand.u32 %s28, 1
        %s151 = smul.addr %s150, 64
        %s152 = scalar_lea.vmem [#allocation2], %s151
        // Predicated region
        $region29: #{tpu_custom_call.1} parent=27 // pred_check
          %p153 = pneg %p41
        $region30: #{tpu_custom_call.1} parent=27 // pred_check_branch
          %155 = sbr.rel (%p153) target = $region32
        $region31: #{tpu_custom_call.1} parent=27 // pred_region
          %156 = dma.done %s149, 1024
        $region32: #{tpu_custom_call.1} parent=27 // pred_fallthru
          _
        // Predicated region
        $region33: #{tpu_custom_call.1} parent=27 // pred_check
          %p157 = pneg %p62
        $region34: #{tpu_custom_call.1} parent=27 // pred_check_branch
          %159 = sbr.rel (%p157) target = $region36
        $region35: #{tpu_custom_call.1} parent=27 // pred_region
          %160 = dma.done [#allocation6], 1024
        $region36: #{tpu_custom_call.1} parent=27 // pred_fallthru
          _
        %s161 = sand.u32 %s28, 1
        %s162 = scalar_lea.sflag [#allocation3], %s161
        %s163 = sand.u32 %s28, 1
        %s164 = smul.addr %s163, 64
        %s165 = scalar_lea.vmem [#allocation2], %s164
        %p166 = pneg %p41
        %p167 = pneg %p38
        %p168 = pneg %p62
        %p169 = pneg %p59
        %p170 = pneg %p88
        %p171 = pneg %p85
        %s172 = sand.u32 %s75, 1
        %s173 = scalar_lea.sflag [#allocation4], %s172
        %s174 = sand.u32 %s75, 1
        %s175 = scalar_lea.vmem [#allocation7], %s174
        %v176 = vld [vmem:[%s152] sm:$0xff]
        %v177 = vld [vmem:[%s152 + $0x8] sm:$0xff]
        %v178 = vld [vmem:[%s152 + $0x10] sm:$0xff]
        %v179 = vld [vmem:[%s152 + $0x18] sm:$0xff]
        %v180 = vld [vmem:[%s152 + $0x20] sm:$0xff]
        %v181 = vld [vmem:[%s152 + $0x28] sm:$0xff]
        %v182 = vld [vmem:[%s152 + $0x30] sm:$0xff]
        %v183 = vld [vmem:[%s152 + $0x38] sm:$0xff]
        %v184 = vld [vmem:[#allocation5] sm:$0xff]
        %v185 = vld [vmem:[#allocation5 + $0x8] sm:$0xff]
        %v186 = vld [vmem:[#allocation5 + $0x10] sm:$0xff]
        %v187 = vld [vmem:[#allocation5 + $0x18] sm:$0xff]
        %v188 = vld [vmem:[#allocation5 + $0x20] sm:$0xff]
        %v189 = vld [vmem:[#allocation5 + $0x28] sm:$0xff]
        %v190 = vld [vmem:[#allocation5 + $0x30] sm:$0xff]
        %v191 = vld [vmem:[#allocation5 + $0x38] sm:$0xff]
        %v192 = vmul.f32 %v176, %v184
        %v193 = vmul.f32 %v177, %v185
        %v194 = vmul.f32 %v178, %v186
        %v195 = vmul.f32 %v179, %v187
        %v196 = vmul.f32 %v180, %v188
        %v197 = vmul.f32 %v181, %v189
        %v198 = vmul.f32 %v182, %v190
        %v199 = vmul.f32 %v183, %v191
        %v200 = vadd.f32 %v192, %v193
        %201 = vadd.xlane.f32.xlu0 %v200
        %v202 = vpop.xlane.xlu0 %201
        %v203 = vadd.f32 %v194, %v195
        %204 = vadd.xlane.f32.xlu0 %v203
        %v205 = vpop.xlane.xlu0 %204
        %v206 = vadd.f32 %v196, %v197
        %207 = vadd.xlane.f32.xlu0 %v206
        %v208 = vpop.xlane.xlu0 %207
        %v209 = vadd.f32 %v198, %v199
        %210 = vadd.xlane.f32.xlu0 %v209
        %v211 = vpop.xlane.xlu0 %210
        %v216 = vlaneseq
        %v217 = vand.u32 %v216, 127
        %v218 = vlaneseq
        %v219 = vshrl.u32 %v218, 7
        %v220 = vsub.s32 %v217, %v219
        %v221 = vrot.slane %v202, %v220
        %v222 = vadd.s32 %v217, 4294967288
        %v223 = vlaneseq
        %v224 = vshrl.u32 %v223, 7
        %v225 = vsub.s32 %v222, %v224
        %v226 = vrot.slane %v205, %v225
        %vm227 = vcmask 130112
        %v228 = vsel %vm227, %v226, %v221
        %v229 = vadd.s32 %v217, 4294967280
        %v230 = vlaneseq
        %v231 = vshrl.u32 %v230, 7
        %v232 = vsub.s32 %v229, %v231
        %v233 = vrot.slane %v208, %v232
        %vm234 = vcmask 195712
        %v235 = vsel %vm234, %v233, %v228
        %v236 = vadd.s32 %v217, 4294967272
        %v237 = vlaneseq
        %v238 = vshrl.u32 %v237, 7
        %v239 = vsub.s32 %v236, %v238
        %v240 = vrot.slane %v211, %v239
        %vm241 = vcmask 261312
        %v242 = vsel %vm241, %v240, %v235
        %vm244 = vcmask 253952
        %245 = vst.msk [vmem:[%s175] sm:$0x1] %vm244, %v242
        %s246 = sand.u32 %s75, 1
        %s247 = scalar_lea.sflag [#allocation4], %s246
        %s248 = sand.u32 %s75, 1
        %s249 = scalar_lea.vmem [#allocation7], %s248
        // Predicated region
        $region37: #{tpu_custom_call.1} parent=27 // pred_check
          %p250 = pneg %p85
        $region38: #{tpu_custom_call.1} parent=27 // pred_check_branch
          %252 = sbr.rel (%p250) target = $region40
        $region39: #{tpu_custom_call.1} parent=27 // pred_region
          %s254 = ssub.s32 16, 16
          %255 = vsyncadd %s247, %s254
          %s256 = smul.addr %s20, 16
          %s257 = scalar_lea.hbm %s2, %s256
          %s259 = sshll.u32 %s249, 4
          %s260 = int_to_ptr.vmem [resolvable:$true] %s259
          %262 = dma.vmem_to_hbm [thread:$0]  %s260, 16, %s257, %s247
        $region40: #{tpu_custom_call.1} parent=27 // pred_fallthru
          _
      $region28: #{tpu_custom_call.1} parent=5 // pred_fallthru
        _
      %p263 = scmp.le.s32.totalorder 2, %s15
      // Predicated region
      $region41: #{tpu_custom_call.1} parent=5 // pred_check
        %p264 = pneg %p263
      $region42: #{tpu_custom_call.1} parent=5 // pred_check_branch
        %266 = sbr.rel (%p264) target = $region44
      $region43: #{tpu_custom_call.1} parent=5 // pred_region
        %s267 = ssub.s32 %s15, 2
        // Predicated region
        $region45: #{tpu_custom_call.1} parent=43 // pred_check
          %p268 = pneg %p91
        $region46: #{tpu_custom_call.1} parent=43 // pred_check_branch
          %270 = sbr.rel (%p268) target = $region48
        $region47: #{tpu_custom_call.1} parent=43 // pred_region
          %s271 = sand.u32 %s76, 1
          %s272 = scalar_lea.sflag [#allocation4], %s271
          %s273 = sand.u32 %s76, 1
          %s274 = scalar_lea.vmem [#allocation7], %s273
          %275 = dma.done %s272, 16
        $region48: #{tpu_custom_call.1} parent=43 // pred_fallthru
          _
      $region44: #{tpu_custom_call.1} parent=5 // pred_fallthru
        _
    $region6: #{tpu_custom_call.1} parent=1 // loop_footer
      %s19 = sadd.s32 1, %s15
    $region7: #{tpu_custom_call.1} parent=1 // loop_footer_branch
      %14 = sbr.rel target = $region3
    $region8: #{tpu_custom_call.1} parent=1 // loop_exit
      _
    %276 = vsyncpa [#allocation3], 1
    %s277 = scalar_lea.sflag [#allocation3], 1
    %278 = vsyncpa %s277, 1
    %279 = vsyncpa [#allocation6], 1
    %280 = vsyncpa [#allocation4], 1
    %s281 = scalar_lea.sflag [#allocation4], 1
    %282 = vsyncpa %s281, 1

</llo_original>
